<compile_context>
chip_gen: v7x
topology: tpu7x:2x2x1
jax: 0.10.0
libtpu: 0.0.40
codegen_flags: <defaults>
</compile_context>

<pallas_src>
import jax
import jax.numpy as jnp
from jax.experimental import pallas as pl
from jax.experimental.pallas import tpu as pltpu

N = 3  # number of mixture weights in the Reweight module

# One padded (8, 128) f32 tile — the real DMA granularity for this tiny block.
_PADDED_TILE_BYTES = 8 * 128 * 4


def _softmax_kernel(w_ref, o_ref):
    # w_ref, o_ref: (1, N) in VMEM; softmax reduction along the lane (last) axis.
    w = w_ref[...].astype(jnp.float32)          # f32 upcast: v5e-safe, free elsewhere
    m = jnp.max(w, axis=-1, keepdims=True)
    e = jnp.exp(w - m)
    s = jnp.sum(e, axis=-1, keepdims=True)
    o_ref[...] = (e * pl.reciprocal(s, approx=False)).astype(o_ref.dtype)


@jax.jit
def reweight_forward_2d(weight_2d: jax.Array) -> jax.Array:
    """weight_2d: (1, N) -> softmax along the last axis, shape (1, N).

    Gridless single-block call: whole array lives in VMEM, no pipelining
    machinery. jit-wrapped so the pure call is cacheable / hoistable.
    """
    n = weight_2d.shape[-1]
    return pl.pallas_call(
        _softmax_kernel,
        out_shape=jax.ShapeDtypeStruct(weight_2d.shape, weight_2d.dtype),
        in_specs=[pl.BlockSpec(memory_space=pltpu.MemorySpace.VMEM)],
        out_specs=pl.BlockSpec(memory_space=pltpu.MemorySpace.VMEM),
        # Scheduling-hint hygiene: model the actual padded-tile traffic.
        cost_estimate=pl.CostEstimate(
            flops=6 * n,                         # max, sub, sum, mul — a few VPU ops/elem
            transcendentals=n,                   # exp per element
            bytes_accessed=2 * _PADDED_TILE_BYTES,
        ),
    )(weight_2d)


@jax.jit
def reweight_forward(weight: jax.Array) -> jax.Array:
    """Module-facing forward(): (N,) parameter -> (N,) softmax, like torch.softmax(w, 0)."""
    return reweight_forward_2d(weight.reshape(1, -1))[0]


if __name__ == "__main__":
    # Deterministic parameter init matching torch.ones(3).
    key = jax.random.PRNGKey(0)  # unused for the value; kept for convention
    weight = jnp.ones((N,), dtype=jnp.float32)

    out = jax.block_until_ready(reweight_forward(weight))

    # Module semantics: softmax over the length-3 parameter vector.
    ref = jax.nn.softmax(weight, axis=0)
    assert out.shape == (N,)
    assert jnp.allclose(out, ref, atol=1e-6), (out, ref)

    # Second call exercises the cached jit executable (no re-trace / re-compile).
    out2 = jax.block_until_ready(reweight_forward(weight * 2.0))
    assert jnp.allclose(out2, jax.nn.softmax(weight * 2.0, axis=0), atol=1e-6)

    print("KERNEL_OK")
</pallas_src>

<mosaic_0001>
module attributes {stable_mosaic.version = 11 : i64} {
  func.func @_softmax_kernel(%arg0: memref<1x3xf32, #tpu.memory_space<vmem>>, %arg1: memref<1x3xf32, #tpu.memory_space<vmem>>) attributes {dimension_semantics = [], scalar_prefetch = 0 : i64, scratch_operands = 0 : i64, tpu.core_type = #tpu.core_type<tc>} {
    %c0 = arith.constant 0 : index
    %c0_0 = arith.constant 0 : index
    %0 = vector.load %arg0[%c0, %c0_0] : memref<1x3xf32, #tpu.memory_space<vmem>>, vector<1x3xf32>
    %cst = arith.constant dense<0xFF800000> : vector<1xf32>
    %1 = vector.multi_reduction <maximumf>, %0, %cst [1] : vector<1x3xf32> to vector<1xf32>
    %2 = vector.shape_cast %1 : vector<1xf32> to vector<1x1xf32>
    %3 = vector.broadcast %2 : vector<1x1xf32> to vector<1x3xf32>
    %4 = arith.subf %0, %3 : vector<1x3xf32>
    %5 = math.exp %4 : vector<1x3xf32>
    %cst_1 = arith.constant dense<0.000000e+00> : vector<1xf32>
    %6 = vector.multi_reduction <add>, %5, %cst_1 [1] : vector<1x3xf32> to vector<1xf32>
    %7 = vector.shape_cast %6 : vector<1xf32> to vector<1x1xf32>
    %8 = tpu.reciprocal %7 : vector<1x1xf32> -> vector<1x1xf32>
    %9 = vector.broadcast %8 : vector<1x1xf32> to vector<1x3xf32>
    %10 = arith.mulf %5, %9 : vector<1x3xf32>
    %c0_2 = arith.constant 0 : index
    %c0_3 = arith.constant 0 : index
    %11 = vector.load %arg1[%c0_2, %c0_3] : memref<1x3xf32, #tpu.memory_space<vmem>>, vector<1x3xf32>
    tpu.vector_store %arg1[%c0_2, %c0_3], %10 {strides = array<i32>} : memref<1x3xf32, #tpu.memory_space<vmem>>, vector<1x3xf32>,
    return
  }
}

</mosaic_0001>

<llo_original>
// kernel: reweight_forward_2d.1
$region0: #{reweight_forward_2d.1}
  #allocation0 [shape = 'u32[]', space=smem, size = 0x4, offset = 0x4, fixed_abs, tag = 'smem constant byte address 0x4 - core index']
  #allocation1 [shape = 'u32[144,128]{1,0:T(1,128)}', space=vmem, size = 0x12000, scoped, tag = 'internal scratch']
  %s0 = inlined_call_operand.hbm [shape: f32[1,3], index: 0, kind: input, shape index: {}]
  %s1 = inlined_call_operand.hbm [shape: f32[1,3], index: 1, kind: output, shape index: {}]
  %s2 = sld [smem:[#allocation0]]
  $region18: #{reweight_forward_2d.1} parent=0
    _
  %s4 = ssub.s32 1, %s2
  %s5 = scalar_select 0, %s4, %s2
  $region1: #{reweight_forward_2d.1} parent=0
    #allocation2 [shape = 'u8[512]{0}', space=vmem, size = 0x400, scoped, tag = 'input window, operand 0, single buffered']
    #allocation3 [shape = 's32[1]{0}', space=sflag, size = 0x4, scoped, tag = 'scoped memory for reweight_forward_2d.1']
    #allocation4 [shape = 's32[1]{0}', space=sflag, size = 0x4, scoped, tag = 'scoped memory for reweight_forward_2d.1']
    #allocation5 [shape = 'u8[512]{0}', space=vmem, size = 0x400, scoped, tag = 'output window, operand 0, single buffered']
    %6 = vsyncpa [#allocation3], 0
    %7 = vsyncpa [#allocation4], 0
    // Predicated region
    $region2: #{reweight_forward_2d.1} parent=1 // pred_check
      _
    $region3: #{reweight_forward_2d.1} parent=1 // pred_check_branch
      %9 = sbr.rel (0) target = $region5
    $region4: #{reweight_forward_2d.1} parent=1 // pred_region
      %s11 = ssub.s32 16, 16
      %12 = vsyncadd [#allocation3], %s11
      %s14 = sshll.u32 [#allocation2], 4
      %s15 = int_to_ptr.vmem [resolvable:$true] %s14
      %17 = dma.hbm_to_vmem [thread:$0]  %s0, 16, %s15, [#allocation3]
    $region5: #{reweight_forward_2d.1} parent=1 // pred_fallthru
      _
    // Predicated region
    $region6: #{reweight_forward_2d.1} parent=1 // pred_check
      _
    $region7: #{reweight_forward_2d.1} parent=1 // pred_check_branch
      %19 = sbr.rel (0) target = $region9
    $region8: #{reweight_forward_2d.1} parent=1 // pred_region
      %20 = dma.done [#allocation3], 16
    $region9: #{reweight_forward_2d.1} parent=1 // pred_fallthru
      _
    %v21 = vld [vmem:[#allocation2] sm:$0x1]
    %vm22 = vcmask 16384
    %v23 = vsel %vm22, %v21, -inf
    %24 = vmax.xlane.f32.xlu0 %v23
    %v25 = vpop.xlane.xlu0 %24
    %v26 = vsub.f32 %v21, %v25
    %v27 = vmul.f32 %v26, 1.442695
    %v28 = vpow.pop %v27
    %v29 = vsel %vm22, %v28, 0.0
    %30 = vadd.xlane.f32.xlu0 %v29
    %v31 = vpop.xlane.xlu0 %30
    %v32 = vrcp.pop %v31
    %v33 = vmul.f32 %v28, %v32
    %34 = vst.msk [vmem:[#allocation5] sm:$0x1] %vm22, %v33
    // Predicated region
    $region10: #{reweight_forward_2d.1} parent=1 // pred_check
      _
    $region11: #{reweight_forward_2d.1} parent=1 // pred_check_branch
      %36 = sbr.rel (0) target = $region13
    $region12: #{reweight_forward_2d.1} parent=1 // pred_region
      %s38 = ssub.s32 16, 16
      %39 = vsyncadd [#allocation4], %s38
      %s41 = sshll.u32 [#allocation5], 4
      %s42 = int_to_ptr.vmem [resolvable:$true] %s41
      %44 = dma.vmem_to_hbm [thread:$0]  %s42, 16, %s1, [#allocation4]
    $region13: #{reweight_forward_2d.1} parent=1 // pred_fallthru
      _
    // Predicated region
    $region14: #{reweight_forward_2d.1} parent=1 // pred_check
      _
    $region15: #{reweight_forward_2d.1} parent=1 // pred_check_branch
      %46 = sbr.rel (0) target = $region17
    $region16: #{reweight_forward_2d.1} parent=1 // pred_region
      %47 = dma.done [#allocation4], 16
    $region17: #{reweight_forward_2d.1} parent=1 // pred_fallthru
      _
    %48 = vsyncpa [#allocation3], 1
    %49 = vsyncpa [#allocation4], 1

</llo_original>
